<compile_context>
chip_gen: v5e
topology: v5e:2x2
jax: 0.10.0
libtpu: 0.0.40
codegen_flags: <defaults>
</compile_context>

<pallas_src>
import functools

import jax
import jax.numpy as jnp
from jax.experimental import pallas as pl
from jax.experimental.pallas import tpu as pltpu


def _round_up(x, m):
    return ((x + m - 1) // m) * m


def _pick_row_tile(n_pad):
    # Prefer >= 2 row tiles so the "parallel" axis can be split across the two
    # TensorCores on v7x; otherwise take the largest 128-multiple divisor.
    for cand in (512, 256, 128):
        if n_pad % cand == 0 and n_pad // cand >= 2:
            return cand
    for cand in (512, 256, 128):
        if n_pad % cand == 0:
            return cand
    return 128


def _pick_k_tile(n_pad):
    for cand in (512, 256, 128):
        if n_pad % cand == 0:
            return cand
    return 128


def _vmem_limit(block_bytes, scratch_bytes):
    # BlockSpec double-buffers every block; add scratch; leave 2x headroom.
    # Clamp to [16 MiB, 48 MiB] (>= v5e scoped default, < v7x physical 64 MiB).
    est = 2 * block_bytes + scratch_bytes
    return int(min(max(2 * est, 16 * 1024 * 1024), 48 * 1024 * 1024))


# ---------------------------------------------------------------------------
# Kernel 1: layer-1 aggregation with fused feature transforms, K-tiled:
#   acc[i]  = sum_k A[i,k] @ (X[k] @ W1)            (f32 accumulator, bf16 MXU)
#   HW2[i]  = relu(acc[i] + b1) @ W2                (at the last K step)
# ---------------------------------------------------------------------------
def layer1_kernel(x_ref, w1_ref, a_ref, b1_ref, w2_ref, hw_ref, acc_ref):
    k = pl.program_id(1)

    @pl.when(k == 0)
    def _():
        acc_ref[...] = jnp.zeros_like(acc_ref)

    # Fused per-K-block feature transform: XW1_blk = X[k] @ W1 (no HBM round trip).
    xw_blk = jnp.dot(x_ref[...], w1_ref[...], preferred_element_type=jnp.float32)
    acc_ref[...] += jnp.dot(
        a_ref[...], xw_blk.astype(jnp.bfloat16), preferred_element_type=jnp.float32
    )

    @pl.when(k == pl.num_programs(1) - 1)
    def _():
        h = jnp.maximum(acc_ref[...] + b1_ref[...], 0.0)  # bias + ReLU in f32
        # TODO(synk): training-mode dropout omitted (eval-mode forward only).
        hw_ref[...] = jnp.dot(
            h.astype(jnp.bfloat16), w2_ref[...], preferred_element_type=jnp.float32
        ).astype(hw_ref.dtype)


# ---------------------------------------------------------------------------
# Kernel 2: layer-2 aggregation, K-tiled, + bias + masked log-softmax.
# Padded class lanes are masked to -inf so they cannot perturb max / logsumexp.
# ---------------------------------------------------------------------------
def layer2_kernel(a_ref, hw_ref, b2_ref, out_ref, acc_ref, *, num_classes):
    k = pl.program_id(1)

    @pl.when(k == 0)
    def _():
        acc_ref[...] = jnp.zeros_like(acc_ref)

    acc_ref[...] += jnp.dot(
        a_ref[...], hw_ref[...], preferred_element_type=jnp.float32
    )

    @pl.when(k == pl.num_programs(1) - 1)
    def _():
        z = acc_ref[...] + b2_ref[...]
        col = jax.lax.broadcasted_iota(jnp.int32, z.shape, 1)
        z_m = jnp.where(col < num_classes, z, -jnp.inf)
        m = jnp.max(z_m, axis=1, keepdims=True)
        lse = jnp.log(jnp.sum(jnp.exp(z_m - m), axis=1, keepdims=True))
        out_ref[...] = z - m - lse  # padded lanes hold junk; sliced off by wrapper


@jax.jit
def gcn_forward(x, edge_index, edge_weight, w1, b1, w2, b2):
    n, f = x.shape
    h = w1.shape[1]
    c = w2.shape[1]

    # Lane dims padded to 128 (lane-dense vregs / stores); rows to the tile sizes.
    n_pad = _round_up(n, 128)
    f_pad = _round_up(f, 128)
    h_pad = _round_up(h, 128)
    c_pad = _round_up(c, 128)
    tm = _pick_row_tile(n_pad)
    tk = _pick_k_tile(n_pad)
    n_i, n_k = n_pad // tm, n_pad // tk

    bf16 = jnp.bfloat16
    # Build the padded bf16 operator directly under jit (scatter + single cast).
    # PyG flow='source_to_target': out[dst] += w * x[src]  =>  A[dst, src] = w.
    src, dst = edge_index[0], edge_index[1]
    a_p = (
        jnp.zeros((n_pad, n_pad), jnp.float32)
        .at[dst, src]
        .add(edge_weight.astype(jnp.float32))
        .astype(bf16)
    )
    x_p = jnp.zeros((n_pad, f_pad), bf16).at[:n, :f].set(x.astype(bf16))
    w1_p = jnp.zeros((f_pad, h_pad), bf16).at[:f, :h].set(w1.astype(bf16))
    b1_p = (
        jnp.zeros((1, h_pad), jnp.float32)
        .at[:, :h]
        .set(b1.astype(jnp.float32).reshape(1, h))
    )
    w2_p = jnp.zeros((h_pad, c_pad), bf16).at[:h, :c].set(w2.astype(bf16))
    b2_p = (
        jnp.zeros((1, c_pad), jnp.float32)
        .at[:, :c]
        .set(b2.astype(jnp.float32).reshape(1, c))
    )

    grid = (n_i, n_k)
    semantics = ("parallel", "arbitrary")

    # --- HW2 = relu(A @ (X @ W1) + b1) @ W2, row- and K-tiled over A ---
    blk1 = (
        tk * f_pad * 2      # X K-slice (bf16)
        + f_pad * h_pad * 2  # W1
        + tm * tk * 2        # A block
        + h_pad * 4          # b1
        + h_pad * c_pad * 2  # W2
        + tm * c_pad * 2     # output block
    )
    hw = pl.pallas_call(
        layer1_kernel,
        out_shape=jax.ShapeDtypeStruct((n_pad, c_pad), bf16),
        grid=grid,
        in_specs=[
            pl.BlockSpec((tk, f_pad), lambda i, k: (k, 0)),     # X K-slice
            pl.BlockSpec((f_pad, h_pad), lambda i, k: (0, 0)),  # W1 (resident)
            pl.BlockSpec((tm, tk), lambda i, k: (i, k)),        # A block (pipelined)
            pl.BlockSpec((1, h_pad), lambda i, k: (0, 0)),      # b1
            pl.BlockSpec((h_pad, c_pad), lambda i, k: (0, 0)),  # W2
        ],
        out_specs=pl.BlockSpec((tm, c_pad), lambda i, k: (i, 0)),
        scratch_shapes=[pltpu.VMEM((tm, h_pad), jnp.float32)],
        compiler_params=pltpu.CompilerParams(
            dimension_semantics=semantics,
            vmem_limit_bytes=_vmem_limit(blk1, tm * h_pad * 4),
        ),
        cost_estimate=pl.CostEstimate(
            flops=2 * n_i * n_pad * f_pad * h_pad
            + 2 * n_pad * n_pad * h_pad
            + 2 * n_pad * h_pad * c_pad,
            transcendentals=0,
            bytes_accessed=2 * n_pad * n_pad
            + 2 * n_i * n_pad * f_pad
            + 2 * (f_pad * h_pad + h_pad * c_pad)
            + 2 * n_pad * c_pad,
        ),
    )(x_p, w1_p, a_p, b1_p, w2_p)

    # --- OUT = log_softmax(A @ HW2 + b2), row- and K-tiled over A ---
    blk2 = tm * tk * 2 + tk * c_pad * 2 + c_pad * 4 + tm * c_pad * 4
    out_pad = pl.pallas_call(
        functools.partial(layer2_kernel, num_classes=c),
        out_shape=jax.ShapeDtypeStruct((n_pad, c_pad), jnp.float32),
        grid=grid,
        in_specs=[
            pl.BlockSpec((tm, tk), lambda i, k: (i, k)),        # A block (pipelined)
            pl.BlockSpec((tk, c_pad), lambda i, k: (k, 0)),     # HW2 K-slice
            pl.BlockSpec((1, c_pad), lambda i, k: (0, 0)),      # b2
        ],
        out_specs=pl.BlockSpec((tm, c_pad), lambda i, k: (i, 0)),
        scratch_shapes=[pltpu.VMEM((tm, c_pad), jnp.float32)],
        compiler_params=pltpu.CompilerParams(
            dimension_semantics=semantics,
            vmem_limit_bytes=_vmem_limit(blk2, tm * c_pad * 4),
        ),
        cost_estimate=pl.CostEstimate(
            flops=2 * n_pad * n_pad * c_pad,
            transcendentals=n_pad * c_pad + n_pad,
            bytes_accessed=2 * n_pad * n_pad + 2 * n_pad * c_pad + 4 * n_pad * c_pad,
        ),
    )(a_p, hw, b2_p)

    return out_pad[:n, :c]


if __name__ == "__main__":
    key = jax.random.PRNGKey(0)
    k_x, k_ei, k_ew, k_w1, k_b1, k_w2, k_b2 = jax.random.split(key, 7)

    # Small synthetic shapes consistent with the module:
    N = 32      # number of nodes
    F_in = 32   # dataset.num_features
    H = 16      # hidden size of conv1
    C = 8       # dataset.num_classes
    E = 128     # number of (GDC-sparsified, weighted) edges

    # Node features (row-normalized, mimicking NormalizeFeatures()).
    x = jax.random.uniform(k_x, (N, F_in), jnp.float32)
    x = x / jnp.clip(jnp.sum(x, axis=1, keepdims=True), 1e-8)

    # Synthetic weighted edge list (stand-in for the GDC-diffused graph).
    edge_index = jax.random.randint(k_ei, (2, E), 0, N, jnp.int32)
    edge_weight = jax.random.uniform(k_ew, (E,), jnp.float32)

    # Deterministic GCNConv parameters (Glorot-style scale, arbitrary but fixed).
    w1 = jax.random.normal(k_w1, (F_in, H), jnp.float32) * (1.0 / jnp.sqrt(F_in))
    b1 = jax.random.normal(k_b1, (1, H), jnp.float32) * 0.01
    w2 = jax.random.normal(k_w2, (H, C), jnp.float32) * (1.0 / jnp.sqrt(H))
    b2 = jax.random.normal(k_b2, (1, C), jnp.float32) * 0.01

    out = gcn_forward(x, edge_index, edge_weight, w1, b1, w2, b2)
    out = jax.block_until_ready(out)

    # Pure-JAX reference matching the kernel's bf16-input / f32-accumulate matmuls.
    adj = (
        jnp.zeros((N, N), jnp.float32)
        .at[edge_index[1], edge_index[0]]
        .add(edge_weight)
    )

    def mm(a, b):
        return jnp.dot(a.astype(jnp.bfloat16), b.astype(jnp.bfloat16),
                       preferred_element_type=jnp.float32)

    xw_ref = mm(x, w1).astype(jnp.bfloat16)
    h_ref = jnp.maximum(mm(adj, xw_ref) + b1, 0.0)
    hw_ref = mm(h_ref, w2).astype(jnp.bfloat16)
    z_ref = mm(adj, hw_ref) + b2
    ref = jax.nn.log_softmax(z_ref, axis=1)

    assert out.shape == (N, C)
    assert jnp.allclose(out, ref, atol=2e-3, rtol=2e-3), float(
        jnp.max(jnp.abs(out - ref))
    )

    print("KERNEL_OK")
</pallas_src>

<mosaic_0001>
module attributes {stable_mosaic.version = 11 : i64} {
  func.func @layer1_kernel(%arg0: i32, %arg1: i32, %arg2: memref<128x128xbf16, #tpu.memory_space<vmem>>, %arg3: memref<128x128xbf16, #tpu.memory_space<vmem>>, %arg4: memref<128x128xbf16, #tpu.memory_space<vmem>>, %arg5: memref<1x128xf32, #tpu.memory_space<vmem>>, %arg6: memref<128x128xbf16, #tpu.memory_space<vmem>>, %arg7: memref<128x128xbf16, #tpu.memory_space<vmem>>, %arg8: memref<128x128xf32, #tpu.memory_space<vmem>>) attributes {dimension_semantics = [#tpu.dimension_semantics<parallel>, #tpu.dimension_semantics<arbitrary>], iteration_bounds = array<i64: 1, 1>, scalar_prefetch = 0 : i64, scratch_operands = 1 : i64, tpu.core_type = #tpu.core_type<tc>, window_params = [{transform_indices = @transform_0, window_bounds = array<i64: 128, 128>}, {pipeline_mode = #tpu.pipeline_mode<synchronous>, transform_indices = @transform_1, window_bounds = array<i64: 128, 128>}, {transform_indices = @transform_2, window_bounds = array<i64: 128, 128>}, {pipeline_mode = #tpu.pipeline_mode<synchronous>, transform_indices = @transform_3, window_bounds = array<i64: 1, 128>}, {pipeline_mode = #tpu.pipeline_mode<synchronous>, transform_indices = @transform_4, window_bounds = array<i64: 128, 128>}, {transform_indices = @transform_5, window_bounds = array<i64: 128, 128>}]} {
    %c0_i32 = arith.constant 0 : i32
    %0 = arith.cmpi eq, %arg1, %c0_i32 : i32
    %1 = arith.extui %0 : i1 to i32
    %c0_i32_0 = arith.constant 0 : i32
    %2 = arith.cmpi ne, %1, %c0_i32_0 : i32
    scf.if %2 {
      %cst_13 = arith.constant 0.000000e+00 : f32
      %15 = vector.broadcast %cst_13 : f32 to vector<128x128xf32>
      %c0_14 = arith.constant 0 : index
      %c0_15 = arith.constant 0 : index
      %16 = vector.load %arg8[%c0_14, %c0_15] : memref<128x128xf32, #tpu.memory_space<vmem>>, vector<128x128xf32>
      tpu.vector_store %arg8[%c0_14, %c0_15], %15 {strides = array<i32>} : memref<128x128xf32, #tpu.memory_space<vmem>>, vector<128x128xf32>,
    } else {
    }
    %c0 = arith.constant 0 : index
    %c0_1 = arith.constant 0 : index
    %3 = vector.load %arg2[%c0, %c0_1] : memref<128x128xbf16, #tpu.memory_space<vmem>>, vector<128x128xbf16>
    %c0_2 = arith.constant 0 : index
    %c0_3 = arith.constant 0 : index
    %4 = vector.load %arg3[%c0_2, %c0_3] : memref<128x128xbf16, #tpu.memory_space<vmem>>, vector<128x128xbf16>
    %cst = arith.constant dense<0.000000e+00> : vector<128x128xf32>
    %5 = tpu.matmul %3, %4, %cst {dimension_numbers = #tpu.dot_dimension_numbers<[1], [0], [0], [1], [0, 0, 1, 1], [], []>} : vector<128x128xbf16>, vector<128x128xbf16>, vector<128x128xf32> -> vector<128x128xf32>
    %c0_4 = arith.constant 0 : index
    %c0_5 = arith.constant 0 : index
    %6 = vector.load %arg8[%c0_4, %c0_5] : memref<128x128xf32, #tpu.memory_space<vmem>>, vector<128x128xf32>
    %c0_6 = arith.constant 0 : index
    %c0_7 = arith.constant 0 : index
    %7 = vector.load %arg4[%c0_6, %c0_7] : memref<128x128xbf16, #tpu.memory_space<vmem>>, vector<128x128xbf16>
    %8 = arith.truncf %5 : vector<128x128xf32> to vector<128x128xbf16>
    %cst_8 = arith.constant dense<0.000000e+00> : vector<128x128xf32>
    %9 = tpu.matmul %7, %8, %cst_8 {dimension_numbers = #tpu.dot_dimension_numbers<[1], [0], [0], [1], [0, 0, 1, 1], [], []>} : vector<128x128xbf16>, vector<128x128xbf16>, vector<128x128xf32> -> vector<128x128xf32>
    %10 = arith.addf %6, %9 : vector<128x128xf32>
    %c0_9 = arith.constant 0 : index
    %c0_10 = arith.constant 0 : index
    %11 = vector.load %arg8[%c0_9, %c0_10] : memref<128x128xf32, #tpu.memory_space<vmem>>, vector<128x128xf32>
    tpu.vector_store %arg8[%c0_9, %c0_10], %10 {strides = array<i32>} : memref<128x128xf32, #tpu.memory_space<vmem>>, vector<128x128xf32>,
    %c0_i32_11 = arith.constant 0 : i32
    %12 = arith.cmpi eq, %arg1, %c0_i32_11 : i32
    %13 = arith.extui %12 : i1 to i32
    %c0_i32_12 = arith.constant 0 : i32
    %14 = arith.cmpi ne, %13, %c0_i32_12 : i32
    scf.if %14 {
      %c0_13 = arith.constant 0 : index
      %c0_14 = arith.constant 0 : index
      %15 = vector.load %arg8[%c0_13, %c0_14] : memref<128x128xf32, #tpu.memory_space<vmem>>, vector<128x128xf32>
      %c0_15 = arith.constant 0 : index
      %c0_16 = arith.constant 0 : index
      %16 = vector.load %arg5[%c0_15, %c0_16] : memref<1x128xf32, #tpu.memory_space<vmem>>, vector<1x128xf32>
      %17 = vector.broadcast %16 : vector<1x128xf32> to vector<128x128xf32>
      %18 = arith.addf %15, %17 : vector<128x128xf32>
      %cst_17 = arith.constant 0.000000e+00 : f32
      %19 = vector.broadcast %cst_17 : f32 to vector<128x128xf32>
      %20 = arith.maximumf %18, %19 : vector<128x128xf32>
      %21 = arith.truncf %20 : vector<128x128xf32> to vector<128x128xbf16>
      %c0_18 = arith.constant 0 : index
      %c0_19 = arith.constant 0 : index
      %22 = vector.load %arg6[%c0_18, %c0_19] : memref<128x128xbf16, #tpu.memory_space<vmem>>, vector<128x128xbf16>
      %cst_20 = arith.constant dense<0.000000e+00> : vector<128x128xf32>
      %23 = tpu.matmul %21, %22, %cst_20 {dimension_numbers = #tpu.dot_dimension_numbers<[1], [0], [0], [1], [0, 0, 1, 1], [], []>} : vector<128x128xbf16>, vector<128x128xbf16>, vector<128x128xf32> -> vector<128x128xf32>
      %24 = arith.truncf %23 : vector<128x128xf32> to vector<128x128xbf16>
      %c0_21 = arith.constant 0 : index
      %c0_22 = arith.constant 0 : index
      %25 = vector.load %arg7[%c0_21, %c0_22] : memref<128x128xbf16, #tpu.memory_space<vmem>>, vector<128x128xbf16>
      tpu.vector_store %arg7[%c0_21, %c0_22], %24 {strides = array<i32>} : memref<128x128xbf16, #tpu.memory_space<vmem>>, vector<128x128xbf16>,
    } else {
    }
    return
  }
  func.func @transform_0(%arg0: i32, %arg1: i32) -> (i32, i32) {
    %c0_i32 = arith.constant 0 : i32
    %c0_i32_0 = arith.constant 0 : i32
    return %arg1, %c0_i32 : i32, i32
  }
  func.func @transform_1(%arg0: i32, %arg1: i32) -> (i32, i32) {
    %c0_i32 = arith.constant 0 : i32
    %c0_i32_0 = arith.constant 0 : i32
    %c0_i32_1 = arith.constant 0 : i32
    return %c0_i32, %c0_i32_0 : i32, i32
  }
  func.func @transform_2(%arg0: i32, %arg1: i32) -> (i32, i32) {
    %c0_i32 = arith.constant 0 : i32
    return %arg0, %arg1 : i32, i32
  }
  func.func @transform_3(%arg0: i32, %arg1: i32) -> (i32, i32) {
    %c0_i32 = arith.constant 0 : i32
    %c0_i32_0 = arith.constant 0 : i32
    %c0_i32_1 = arith.constant 0 : i32
    return %c0_i32, %c0_i32_0 : i32, i32
  }
  func.func @transform_4(%arg0: i32, %arg1: i32) -> (i32, i32) {
    %c0_i32 = arith.constant 0 : i32
    %c0_i32_0 = arith.constant 0 : i32
    %c0_i32_1 = arith.constant 0 : i32
    return %c0_i32, %c0_i32_0 : i32, i32
  }
  func.func @transform_5(%arg0: i32, %arg1: i32) -> (i32, i32) {
    %c0_i32 = arith.constant 0 : i32
    %c0_i32_0 = arith.constant 0 : i32
    return %arg0, %c0_i32 : i32, i32
  }
}

module attributes {stable_mosaic.version = 11 : i64} {
  func.func @layer2_kernel(%arg0: i32, %arg1: i32, %arg2: memref<128x128xbf16, #tpu.memory_space<vmem>>, %arg3: memref<128x128xbf16, #tpu.memory_space<vmem>>, %arg4: memref<1x128xf32, #tpu.memory_space<vmem>>, %arg5: memref<128x128xf32, #tpu.memory_space<vmem>>, %arg6: memref<128x128xf32, #tpu.memory_space<vmem>>) attributes {dimension_semantics = [#tpu.dimension_semantics<parallel>, #tpu.dimension_semantics<arbitrary>], iteration_bounds = array<i64: 1, 1>, scalar_prefetch = 0 : i64, scratch_operands = 1 : i64, tpu.core_type = #tpu.core_type<tc>, window_params = [{transform_indices = @transform_0, window_bounds = array<i64: 128, 128>}, {transform_indices = @transform_1, window_bounds = array<i64: 128, 128>}, {pipeline_mode = #tpu.pipeline_mode<synchronous>, transform_indices = @transform_2, window_bounds = array<i64: 1, 128>}, {transform_indices = @transform_3, window_bounds = array<i64: 128, 128>}]} {
    %c0_i32 = arith.constant 0 : i32
    %0 = arith.cmpi eq, %arg1, %c0_i32 : i32
    %1 = arith.extui %0 : i1 to i32
    %c0_i32_0 = arith.constant 0 : i32
    %2 = arith.cmpi ne, %1, %c0_i32_0 : i32
    scf.if %2 {
      %cst_10 = arith.constant 0.000000e+00 : f32
      %12 = vector.broadcast %cst_10 : f32 to vector<128x128xf32>
      %c0_11 = arith.constant 0 : index
      %c0_12 = arith.constant 0 : index
      %13 = vector.load %arg6[%c0_11, %c0_12] : memref<128x128xf32, #tpu.memory_space<vmem>>, vector<128x128xf32>
      tpu.vector_store %arg6[%c0_11, %c0_12], %12 {strides = array<i32>} : memref<128x128xf32, #tpu.memory_space<vmem>>, vector<128x128xf32>,
    } else {
    }
    %c0 = arith.constant 0 : index
    %c0_1 = arith.constant 0 : index
    %3 = vector.load %arg6[%c0, %c0_1] : memref<128x128xf32, #tpu.memory_space<vmem>>, vector<128x128xf32>
    %c0_2 = arith.constant 0 : index
    %c0_3 = arith.constant 0 : index
    %4 = vector.load %arg2[%c0_2, %c0_3] : memref<128x128xbf16, #tpu.memory_space<vmem>>, vector<128x128xbf16>
    %c0_4 = arith.constant 0 : index
    %c0_5 = arith.constant 0 : index
    %5 = vector.load %arg3[%c0_4, %c0_5] : memref<128x128xbf16, #tpu.memory_space<vmem>>, vector<128x128xbf16>
    %cst = arith.constant dense<0.000000e+00> : vector<128x128xf32>
    %6 = tpu.matmul %4, %5, %cst {dimension_numbers = #tpu.dot_dimension_numbers<[1], [0], [0], [1], [0, 0, 1, 1], [], []>} : vector<128x128xbf16>, vector<128x128xbf16>, vector<128x128xf32> -> vector<128x128xf32>
    %7 = arith.addf %3, %6 : vector<128x128xf32>
    %c0_6 = arith.constant 0 : index
    %c0_7 = arith.constant 0 : index
    %8 = vector.load %arg6[%c0_6, %c0_7] : memref<128x128xf32, #tpu.memory_space<vmem>>, vector<128x128xf32>
    tpu.vector_store %arg6[%c0_6, %c0_7], %7 {strides = array<i32>} : memref<128x128xf32, #tpu.memory_space<vmem>>, vector<128x128xf32>,
    %c0_i32_8 = arith.constant 0 : i32
    %9 = arith.cmpi eq, %arg1, %c0_i32_8 : i32
    %10 = arith.extui %9 : i1 to i32
    %c0_i32_9 = arith.constant 0 : i32
    %11 = arith.cmpi ne, %10, %c0_i32_9 : i32
    scf.if %11 {
      %c0_10 = arith.constant 0 : index
      %c0_11 = arith.constant 0 : index
      %12 = vector.load %arg6[%c0_10, %c0_11] : memref<128x128xf32, #tpu.memory_space<vmem>>, vector<128x128xf32>
      %c0_12 = arith.constant 0 : index
      %c0_13 = arith.constant 0 : index
      %13 = vector.load %arg4[%c0_12, %c0_13] : memref<1x128xf32, #tpu.memory_space<vmem>>, vector<1x128xf32>
      %14 = vector.broadcast %13 : vector<1x128xf32> to vector<128x128xf32>
      %15 = arith.addf %12, %14 : vector<128x128xf32>
      %16 = tpu.iota {dimensions = array<i32: 1>} : vector<128x128xi32>
      %c8_i32 = arith.constant 8 : i32
      %17 = vector.broadcast %c8_i32 : i32 to vector<128x128xi32>
      %18 = arith.cmpi slt, %16, %17 : vector<128x128xi32>
      %cst_14 = arith.constant 0xFF800000 : f32
      %19 = vector.broadcast %cst_14 : f32 to vector<128x128xf32>
      %20 = arith.select %18, %15, %19 : vector<128x128xi1>, vector<128x128xf32>
      %cst_15 = arith.constant dense<0xFF800000> : vector<128xf32>
      %21 = vector.multi_reduction <maximumf>, %20, %cst_15 [1] : vector<128x128xf32> to vector<128xf32>
      %22 = vector.shape_cast %21 : vector<128xf32> to vector<128x1xf32>
      %23 = vector.broadcast %22 : vector<128x1xf32> to vector<128x128xf32>
      %24 = arith.subf %20, %23 : vector<128x128xf32>
      %25 = math.exp %24 : vector<128x128xf32>
      %cst_16 = arith.constant dense<0.000000e+00> : vector<128xf32>
      %26 = vector.multi_reduction <add>, %25, %cst_16 [1] : vector<128x128xf32> to vector<128xf32>
      %27 = vector.shape_cast %26 : vector<128xf32> to vector<128x1xf32>
      %28 = math.log %27 : vector<128x1xf32>
      %29 = vector.broadcast %22 : vector<128x1xf32> to vector<128x128xf32>
      %30 = arith.subf %15, %29 : vector<128x128xf32>
      %31 = vector.broadcast %28 : vector<128x1xf32> to vector<128x128xf32>
      %32 = arith.subf %30, %31 : vector<128x128xf32>
      %c0_17 = arith.constant 0 : index
      %c0_18 = arith.constant 0 : index
      %33 = vector.load %arg5[%c0_17, %c0_18] : memref<128x128xf32, #tpu.memory_space<vmem>>, vector<128x128xf32>
      tpu.vector_store %arg5[%c0_17, %c0_18], %32 {strides = array<i32>} : memref<128x128xf32, #tpu.memory_space<vmem>>, vector<128x128xf32>,
    } else {
    }
    return
  }
  func.func @transform_0(%arg0: i32, %arg1: i32) -> (i32, i32) {
    %c0_i32 = arith.constant 0 : i32
    return %arg0, %arg1 : i32, i32
  }
  func.func @transform_1(%arg0: i32, %arg1: i32) -> (i32, i32) {
    %c0_i32 = arith.constant 0 : i32
    %c0_i32_0 = arith.constant 0 : i32
    return %arg1, %c0_i32 : i32, i32
  }
  func.func @transform_2(%arg0: i32, %arg1: i32) -> (i32, i32) {
    %c0_i32 = arith.constant 0 : i32
    %c0_i32_0 = arith.constant 0 : i32
    %c0_i32_1 = arith.constant 0 : i32
    return %c0_i32, %c0_i32_0 : i32, i32
  }
  func.func @transform_3(%arg0: i32, %arg1: i32) -> (i32, i32) {
    %c0_i32 = arith.constant 0 : i32
    %c0_i32_0 = arith.constant 0 : i32
    return %arg0, %c0_i32 : i32, i32
  }
}

</mosaic_0001>

<llo_original>
// kernel: gcn_forward.3
$region0: #{gcn_forward.3}
  #allocation0 [shape = 'u32[]', space=smem, size = 0x4, offset = 0x4, fixed_abs, tag = 'smem constant byte address 0x4 - core index']
  #allocation1 [shape = 'u32[72,128]{1,0:T(1,128)}', space=vmem, size = 0x9000, scoped, tag = 'internal scratch']
  #allocation2 [shape = 'f32[128,128]{1,0:T(8,128)}', space=vmem, size = 0x10000, scoped, tag = 'scratch operand']
  %s0 = inlined_call_operand.vmem [shape: bf16[128,128], index: 0, kind: input, shape index: {}]
  %s1 = inlined_call_operand.vmem [shape: bf16[128,128], index: 1, kind: input, shape index: {}]
  %s2 = inlined_call_operand.vmem [shape: f32[1,128], index: 2, kind: input, shape index: {}]
  %s3 = inlined_call_operand.vmem [shape: f32[128,128], index: 3, kind: output, shape index: {}]
  %s4 = sld [smem:[#allocation0]]
  $region30: #{gcn_forward.3} parent=0
    _
  %s6 = ssub.s32 1, %s4
  %s7 = scalar_select 0, %s6, %s4
  // Predicated region
  $region2: #{gcn_forward.3} parent=0 // pred_check
    _
  $region3: #{gcn_forward.3} parent=0 // pred_check_branch
    %9 = sbr.rel (0) target = $region5
  $region4: #{gcn_forward.3} parent=0 // pred_region
    _
  $region5: #{gcn_forward.3} parent=0 // pred_fallthru
    _
  // Predicated region
  $region6: #{gcn_forward.3} parent=0 // pred_check
    _
  $region7: #{gcn_forward.3} parent=0 // pred_check_branch
    %11 = sbr.rel (0) target = $region9
  $region8: #{gcn_forward.3} parent=0 // pred_region
    _
  $region9: #{gcn_forward.3} parent=0 // pred_fallthru
    _
  // Predicated region
  $region10: #{gcn_forward.3} parent=0 // pred_check
    _
  $region11: #{gcn_forward.3} parent=0 // pred_check_branch
    %13 = sbr.rel (0) target = $region13
  $region12: #{gcn_forward.3} parent=0 // pred_region
    _
  $region13: #{gcn_forward.3} parent=0 // pred_fallthru
    _
  %p14 = scmp.eq.s32.totalorder 0, 0
  // Predicated region
  $region14: #{gcn_forward.3} parent=0 // pred_check
    %p15 = pneg %p14
  $region15: #{gcn_forward.3} parent=0 // pred_check_branch
    %17 = sbr.rel (%p15) target = $region17
  $region16: #{gcn_forward.3} parent=0 // pred_region
    %18 = vst [vmem:[#allocation2] sm:$0xff] 0.0
    %19 = vst [vmem:[#allocation2 + $0x8] sm:$0xff] 0.0
    %20 = vst [vmem:[#allocation2 + $0x10] sm:$0xff] 0.0
    %21 = vst [vmem:[#allocation2 + $0x18] sm:$0xff] 0.0
    %22 = vst [vmem:[#allocation2 + $0x20] sm:$0xff] 0.0
    %23 = vst [vmem:[#allocation2 + $0x28] sm:$0xff] 0.0
    %24 = vst [vmem:[#allocation2 + $0x30] sm:$0xff] 0.0
    %25 = vst [vmem:[#allocation2 + $0x38] sm:$0xff] 0.0
    %26 = vst [vmem:[#allocation2 + $0x40] sm:$0xff] 0.0
    %27 = vst [vmem:[#allocation2 + $0x48] sm:$0xff] 0.0
    %28 = vst [vmem:[#allocation2 + $0x50] sm:$0xff] 0.0
    %29 = vst [vmem:[#allocation2 + $0x58] sm:$0xff] 0.0
    %30 = vst [vmem:[#allocation2 + $0x60] sm:$0xff] 0.0
    %31 = vst [vmem:[#allocation2 + $0x68] sm:$0xff] 0.0
    %32 = vst [vmem:[#allocation2 + $0x70] sm:$0xff] 0.0
    %33 = vst [vmem:[#allocation2 + $0x78] sm:$0xff] 0.0
  $region17: #{gcn_forward.3} parent=0 // pred_fallthru
    _
  %v34 = vld [vmem:[#allocation2] sm:$0xff]
  %v35 = vld [vmem:[#allocation2 + $0x8] sm:$0xff]
  %v36 = vld [vmem:[#allocation2 + $0x10] sm:$0xff]
  %v37 = vld [vmem:[#allocation2 + $0x18] sm:$0xff]
  %v38 = vld [vmem:[#allocation2 + $0x20] sm:$0xff]
  %v39 = vld [vmem:[#allocation2 + $0x28] sm:$0xff]
  %v40 = vld [vmem:[#allocation2 + $0x30] sm:$0xff]
  %v41 = vld [vmem:[#allocation2 + $0x38] sm:$0xff]
  %v42 = vld [vmem:[#allocation2 + $0x40] sm:$0xff]
  %v43 = vld [vmem:[#allocation2 + $0x48] sm:$0xff]
  %v44 = vld [vmem:[#allocation2 + $0x50] sm:$0xff]
  %v45 = vld [vmem:[#allocation2 + $0x58] sm:$0xff]
  %v46 = vld [vmem:[#allocation2 + $0x60] sm:$0xff]
  %v47 = vld [vmem:[#allocation2 + $0x68] sm:$0xff]
  %v48 = vld [vmem:[#allocation2 + $0x70] sm:$0xff]
  %v49 = vld [vmem:[#allocation2 + $0x78] sm:$0xff]
  %v50 = vld [vmem:[%s0] sm:$0xf]
  %v51 = vld [vmem:[%s0 + $0x4] sm:$0xf]
  %v52 = vld [vmem:[%s0 + $0x8] sm:$0xf]
  %v53 = vld [vmem:[%s0 + $0xc] sm:$0xf]
  %v54 = vld [vmem:[%s0 + $0x10] sm:$0xf]
  %v55 = vld [vmem:[%s0 + $0x14] sm:$0xf]
  %v56 = vld [vmem:[%s0 + $0x18] sm:$0xf]
  %v57 = vld [vmem:[%s0 + $0x1c] sm:$0xf]
  %v58 = vld [vmem:[%s0 + $0x20] sm:$0xf]
  %v59 = vld [vmem:[%s0 + $0x24] sm:$0xf]
  %v60 = vld [vmem:[%s0 + $0x28] sm:$0xf]
  %v61 = vld [vmem:[%s0 + $0x2c] sm:$0xf]
  %v62 = vld [vmem:[%s0 + $0x30] sm:$0xf]
  %v63 = vld [vmem:[%s0 + $0x34] sm:$0xf]
  %v64 = vld [vmem:[%s0 + $0x38] sm:$0xf]
  %v65 = vld [vmem:[%s0 + $0x3c] sm:$0xf]
  %v66 = vld [vmem:[%s1] sm:$0xf]
  %v67 = vld [vmem:[%s1 + $0x4] sm:$0xf]
  %v68 = vld [vmem:[%s1 + $0x8] sm:$0xf]
  %v69 = vld [vmem:[%s1 + $0xc] sm:$0xf]
  %v70 = vld [vmem:[%s1 + $0x10] sm:$0xf]
  %v71 = vld [vmem:[%s1 + $0x14] sm:$0xf]
  %v72 = vld [vmem:[%s1 + $0x18] sm:$0xf]
  %v73 = vld [vmem:[%s1 + $0x1c] sm:$0xf]
  %v74 = vld [vmem:[%s1 + $0x20] sm:$0xf]
  %v75 = vld [vmem:[%s1 + $0x24] sm:$0xf]
  %v76 = vld [vmem:[%s1 + $0x28] sm:$0xf]
  %v77 = vld [vmem:[%s1 + $0x2c] sm:$0xf]
  %v78 = vld [vmem:[%s1 + $0x30] sm:$0xf]
  %v79 = vld [vmem:[%s1 + $0x34] sm:$0xf]
  %v80 = vld [vmem:[%s1 + $0x38] sm:$0xf]
  %v81 = vld [vmem:[%s1 + $0x3c] sm:$0xf]
  %v98 = vunpack.c.l.b16 %v50
  %v99 = vunpack.c.l.b16 %v51
  %v100 = vunpack.c.l.b16 %v52
  %v101 = vunpack.c.l.b16 %v53
  %v102 = vunpack.c.l.b16 %v54
  %v103 = vunpack.c.l.b16 %v55
  %v104 = vunpack.c.l.b16 %v56
  %v105 = vunpack.c.l.b16 %v57
  %v106 = vunpack.c.l.b16 %v58
  %v107 = vunpack.c.l.b16 %v59
  %v108 = vunpack.c.l.b16 %v60
  %v109 = vunpack.c.l.b16 %v61
  %v110 = vunpack.c.l.b16 %v62
  %v111 = vunpack.c.l.b16 %v63
  %v112 = vunpack.c.l.b16 %v64
  %v113 = vunpack.c.l.b16 %v65
  %v114 = vpack.c.b16 %v99, %v98
  %v115 = vpack.c.b16 %v101, %v100
  %v116 = vpack.c.b16 %v103, %v102
  %v117 = vpack.c.b16 %v105, %v104
  %v118 = vpack.c.b16 %v107, %v106
  %v119 = vpack.c.b16 %v109, %v108
  %v120 = vpack.c.b16 %v111, %v110
  %v121 = vpack.c.b16 %v113, %v112
  %v146 = vunpack.c.l.b16 %v66
  %v147 = vunpack.c.l.b16 %v67
  %v148 = vunpack.c.l.b16 %v68
  %v149 = vunpack.c.l.b16 %v69
  %v150 = vunpack.c.l.b16 %v70
  %v151 = vunpack.c.l.b16 %v71
  %v152 = vunpack.c.l.b16 %v72
  %v153 = vunpack.c.l.b16 %v73
  %v154 = vunpack.c.l.b16 %v74
  %v155 = vunpack.c.l.b16 %v75
  %v156 = vunpack.c.l.b16 %v76
  %v157 = vunpack.c.l.b16 %v77
  %v158 = vunpack.c.l.b16 %v78
  %v159 = vunpack.c.l.b16 %v79
  %v160 = vunpack.c.l.b16 %v80
  %v161 = vunpack.c.l.b16 %v81
  %v162 = vpack.c.b16 %v147, %v146
  %v163 = vpack.c.b16 %v149, %v148
  %v164 = vpack.c.b16 %v151, %v150
  %v165 = vpack.c.b16 %v153, %v152
  %v166 = vpack.c.b16 %v155, %v154
  %v167 = vpack.c.b16 %v157, %v156
  %v168 = vpack.c.b16 %v159, %v158
  %v169 = vpack.c.b16 %v161, %v160
  %178 = vmatpush.bf16.msra.mxu0 %v169
  %179 = vmatpush.bf16.msra.mxu0 %v168
  %180 = vmatpush.bf16.msra.mxu0 %v167
  %181 = vmatpush.bf16.msra.mxu0 %v166
  %182 = vmatpush.bf16.msra.mxu0 %v165
  %183 = vmatpush.bf16.msra.mxu0 %v164
  %184 = vmatpush.bf16.msra.mxu0 %v163
  %185 = vmatpush.bf16.msra.mxu0 %v162
  %186 = vmatmul.bf16.gmra.mxu0 %v114
  %v187 = vpop.f32.mrf.mxu0
  %v188 = vadd.f32 0.0, %v187
  %v189 = vpop.f32.mrf.mxu0
  %v190 = vadd.f32 0.0, %v189
  %191 = vmatmul.bf16.gmra.mxu0 %v115
  %v192 = vpop.f32.mrf.mxu0
  %v193 = vadd.f32 0.0, %v192
  %v194 = vpop.f32.mrf.mxu0
  %v195 = vadd.f32 0.0, %v194
  %196 = vmatmul.bf16.gmra.mxu0 %v116
  %v197 = vpop.f32.mrf.mxu0
  %v198 = vadd.f32 0.0, %v197
  %v199 = vpop.f32.mrf.mxu0
  %v200 = vadd.f32 0.0, %v199
  %201 = vmatmul.bf16.gmra.mxu0 %v117
  %v202 = vpop.f32.mrf.mxu0
  %v203 = vadd.f32 0.0, %v202
  %v204 = vpop.f32.mrf.mxu0
  %v205 = vadd.f32 0.0, %v204
  %206 = vmatmul.bf16.gmra.mxu0 %v118
  %v207 = vpop.f32.mrf.mxu0
  %v208 = vadd.f32 0.0, %v207
  %v209 = vpop.f32.mrf.mxu0
  %v210 = vadd.f32 0.0, %v209
  %211 = vmatmul.bf16.gmra.mxu0 %v119
  %v212 = vpop.f32.mrf.mxu0
  %v213 = vadd.f32 0.0, %v212
  %v214 = vpop.f32.mrf.mxu0
  %v215 = vadd.f32 0.0, %v214
  %216 = vmatmul.bf16.gmra.mxu0 %v120
  %v217 = vpop.f32.mrf.mxu0
  %v218 = vadd.f32 0.0, %v217
  %v219 = vpop.f32.mrf.mxu0
  %v220 = vadd.f32 0.0, %v219
  %221 = vmatmul.bf16.gmra.mxu0 %v121
  %v222 = vpop.f32.mrf.mxu0
  %v223 = vadd.f32 0.0, %v222
  %v224 = vpop.f32.mrf.mxu0
  %v225 = vadd.f32 0.0, %v224
  %226 = vdwg.mxu0
  %v227 = vadd.f32 %v34, %v188
  %v228 = vadd.f32 %v35, %v190
  %v229 = vadd.f32 %v36, %v193
  %v230 = vadd.f32 %v37, %v195
  %v231 = vadd.f32 %v38, %v198
  %v232 = vadd.f32 %v39, %v200
  %v233 = vadd.f32 %v40, %v203
  %v234 = vadd.f32 %v41, %v205
  %v235 = vadd.f32 %v42, %v208
  %v236 = vadd.f32 %v43, %v210
  %v237 = vadd.f32 %v44, %v213
  %v238 = vadd.f32 %v45, %v215
  %v239 = vadd.f32 %v46, %v218
  %v240 = vadd.f32 %v47, %v220
  %v241 = vadd.f32 %v48, %v223
  %v242 = vadd.f32 %v49, %v225
  %243 = vst [vmem:[#allocation2] sm:$0xff] %v227
  %244 = vst [vmem:[#allocation2 + $0x8] sm:$0xff] %v228
  %245 = vst [vmem:[#allocation2 + $0x10] sm:$0xff] %v229
  %246 = vst [vmem:[#allocation2 + $0x18] sm:$0xff] %v230
  %247 = vst [vmem:[#allocation2 + $0x20] sm:$0xff] %v231
  %248 = vst [vmem:[#allocation2 + $0x28] sm:$0xff] %v232
  %249 = vst [vmem:[#allocation2 + $0x30] sm:$0xff] %v233
  %250 = vst [vmem:[#allocation2 + $0x38] sm:$0xff] %v234
  %251 = vst [vmem:[#allocation2 + $0x40] sm:$0xff] %v235
  %252 = vst [vmem:[#allocation2 + $0x48] sm:$0xff] %v236
  %253 = vst [vmem:[#allocation2 + $0x50] sm:$0xff] %v237
  %254 = vst [vmem:[#allocation2 + $0x58] sm:$0xff] %v238
  %255 = vst [vmem:[#allocation2 + $0x60] sm:$0xff] %v239
  %256 = vst [vmem:[#allocation2 + $0x68] sm:$0xff] %v240
  %257 = vst [vmem:[#allocation2 + $0x70] sm:$0xff] %v241
  %258 = vst [vmem:[#allocation2 + $0x78] sm:$0xff] %v242
  // Predicated region
  $region18: #{gcn_forward.3} parent=0 // pred_check
    %p259 = pneg %p14
  $region19: #{gcn_forward.3} parent=0 // pred_check_branch
    %261 = sbr.rel (%p259) target = $region21
  $region20: #{gcn_forward.3} parent=0 // pred_region
    %v262 = vld [vmem:[#allocation2] sm:$0xff]
    %v263 = vld [vmem:[#allocation2 + $0x8] sm:$0xff]
    %v264 = vld [vmem:[#allocation2 + $0x10] sm:$0xff]
    %v265 = vld [vmem:[#allocation2 + $0x18] sm:$0xff]
    %v266 = vld [vmem:[#allocation2 + $0x20] sm:$0xff]
    %v267 = vld [vmem:[#allocation2 + $0x28] sm:$0xff]
    %v268 = vld [vmem:[#allocation2 + $0x30] sm:$0xff]
    %v269 = vld [vmem:[#allocation2 + $0x38] sm:$0xff]
    %v270 = vld [vmem:[#allocation2 + $0x40] sm:$0xff]
    %v271 = vld [vmem:[#allocation2 + $0x48] sm:$0xff]
    %v272 = vld [vmem:[#allocation2 + $0x50] sm:$0xff]
    %v273 = vld [vmem:[#allocation2 + $0x58] sm:$0xff]
    %v274 = vld [vmem:[#allocation2 + $0x60] sm:$0xff]
    %v275 = vld [vmem:[#allocation2 + $0x68] sm:$0xff]
    %v276 = vld [vmem:[#allocation2 + $0x70] sm:$0xff]
    %v277 = vld [vmem:[#allocation2 + $0x78] sm:$0xff]
    %v278 = vld [vmem:[%s2] sm:$0x1]
    %v280 = vperm.slane %v278, 0
    %v282 = vadd.f32 %v262, %v280
    %v283 = vadd.f32 %v263, %v280
    %v284 = vadd.f32 %v264, %v280
    %v285 = vadd.f32 %v265, %v280
    %v286 = vadd.f32 %v266, %v280
    %v287 = vadd.f32 %v267, %v280
    %v288 = vadd.f32 %v268, %v280
    %v289 = vadd.f32 %v269, %v280
    %v290 = vadd.f32 %v270, %v280
    %v291 = vadd.f32 %v271, %v280
    %v292 = vadd.f32 %v272, %v280
    %v293 = vadd.f32 %v273, %v280
    %v294 = vadd.f32 %v274, %v280
    %v295 = vadd.f32 %v275, %v280
    %v296 = vadd.f32 %v276, %v280
    %v297 = vadd.f32 %v277, %v280
    %v298 = vlaneseq
    %v299 = vand.u32 %v298, 127
    %vm300 = vcmp.lt.s32.totalorder %v299, 8
    %v301 = vsel %vm300, %v282, -inf
    %v302 = vsel %vm300, %v283, -inf
    %v303 = vsel %vm300, %v284, -inf
    %v304 = vsel %vm300, %v285, -inf
    %v305 = vsel %vm300, %v286, -inf
    %v306 = vsel %vm300, %v287, -inf
    %v307 = vsel %vm300, %v288, -inf
    %v308 = vsel %vm300, %v289, -inf
    %v309 = vsel %vm300, %v290, -inf
    %v310 = vsel %vm300, %v291, -inf
    %v311 = vsel %vm300, %v292, -inf
    %v312 = vsel %vm300, %v293, -inf
    %v313 = vsel %vm300, %v294, -inf
    %v314 = vsel %vm300, %v295, -inf
    %v315 = vsel %vm300, %v296, -inf
    %v316 = vsel %vm300, %v297, -inf
    %317 = vmax.xlane.f32.xlu0 %v301
    %v318 = vpop.xlane.xlu0 %317
    %319 = vmax.xlane.f32.xlu0 %v302
    %v320 = vpop.xlane.xlu0 %319
    %321 = vmax.xlane.f32.xlu0 %v303
    %v322 = vpop.xlane.xlu0 %321
    %323 = vmax.xlane.f32.xlu0 %v304
    %v324 = vpop.xlane.xlu0 %323
    %325 = vmax.xlane.f32.xlu0 %v305
    %v326 = vpop.xlane.xlu0 %325
    %327 = vmax.xlane.f32.xlu0 %v306
    %v328 = vpop.xlane.xlu0 %327
    %329 = vmax.xlane.f32.xlu0 %v307
    %v330 = vpop.xlane.xlu0 %329
    %331 = vmax.xlane.f32.xlu0 %v308
    %v332 = vpop.xlane.xlu0 %331
    %333 = vmax.xlane.f32.xlu0 %v309
    %v334 = vpop.xlane.xlu0 %333
    %335 = vmax.xlane.f32.xlu0 %v310
    %v336 = vpop.xlane.xlu0 %335
    %337 = vmax.xlane.f32.xlu0 %v311
    %v338 = vpop.xlane.xlu0 %337
    %339 = vmax.xlane.f32.xlu0 %v312
    %v340 = vpop.xlane.xlu0 %339
    %341 = vmax.xlane.f32.xlu0 %v313
    %v342 = vpop.xlane.xlu0 %341
    %343 = vmax.xlane.f32.xlu0 %v314
    %v344 = vpop.xlane.xlu0 %343
    %345 = vmax.xlane.f32.xlu0 %v315
    %v346 = vpop.xlane.xlu0 %345
    %347 = vmax.xlane.f32.xlu0 %v316
    %v348 = vpop.xlane.xlu0 %347
    %v349 = vsub.f32 %v301, %v318
    %v350 = vsub.f32 %v302, %v320
    %v351 = vsub.f32 %v303, %v322
    %v352 = vsub.f32 %v304, %v324
    %v353 = vsub.f32 %v305, %v326
    %v354 = vsub.f32 %v306, %v328
    %v355 = vsub.f32 %v307, %v330
    %v356 = vsub.f32 %v308, %v332
    %v357 = vsub.f32 %v309, %v334
    %v358 = vsub.f32 %v310, %v336
    %v359 = vsub.f32 %v311, %v338
    %v360 = vsub.f32 %v312, %v340
    %v361 = vsub.f32 %v313, %v342
    %v362 = vsub.f32 %v314, %v344
    %v363 = vsub.f32 %v315, %v346
    %v364 = vsub.f32 %v316, %v348
    %v365 = vmul.f32 %v349, 1.442695
    %v366 = vpow.pop %v365
    %v367 = vmul.f32 %v350, 1.442695
    %v368 = vpow.pop %v367
    %v369 = vmul.f32 %v351, 1.442695
    %v370 = vpow.pop %v369
    %v371 = vmul.f32 %v352, 1.442695
    %v372 = vpow.pop %v371
    %v373 = vmul.f32 %v353, 1.442695
    %v374 = vpow.pop %v373
    %v375 = vmul.f32 %v354, 1.442695
    %v376 = vpow.pop %v375
    %v377 = vmul.f32 %v355, 1.442695
    %v378 = vpow.pop %v377
    %v379 = vmul.f32 %v356, 1.442695
    %v380 = vpow.pop %v379
    %v381 = vmul.f32 %v357, 1.442695
    %v382 = vpow.pop %v381
    %v383 = vmul.f32 %v358, 1.442695
    %v384 = vpow.pop %v383
    %v385 = vmul.f32 %v359, 1.442695
    %v386 = vpow.pop %v385
    %v387 = vmul.f32 %v360, 1.442695
    %v388 = vpow.pop %v387
    %v389 = vmul.f32 %v361, 1.442695
    %v390 = vpow.pop %v389
    %v391 = vmul.f32 %v362, 1.442695
    %v392 = vpow.pop %v391
    %v393 = vmul.f32 %v363, 1.442695
    %v394 = vpow.pop %v393
    %v395 = vmul.f32 %v364, 1.442695
    %v396 = vpow.pop %v395
    %397 = vadd.xlane.f32.xlu0 %v366
    %v398 = vpop.xlane.xlu0 %397
    %399 = vadd.xlane.f32.xlu0 %v368
    %v400 = vpop.xlane.xlu0 %399
    %401 = vadd.xlane.f32.xlu0 %v370
    %v402 = vpop.xlane.xlu0 %401
    %403 = vadd.xlane.f32.xlu0 %v372
    %v404 = vpop.xlane.xlu0 %403
    %405 = vadd.xlane.f32.xlu0 %v374
    %v406 = vpop.xlane.xlu0 %405
    %407 = vadd.xlane.f32.xlu0 %v376
    %v408 = vpop.xlane.xlu0 %407
    %409 = vadd.xlane.f32.xlu0 %v378
    %v410 = vpop.xlane.xlu0 %409
    %411 = vadd.xlane.f32.xlu0 %v380
    %v412 = vpop.xlane.xlu0 %411
    %413 = vadd.xlane.f32.xlu0 %v382
    %v414 = vpop.xlane.xlu0 %413
    %415 = vadd.xlane.f32.xlu0 %v384
    %v416 = vpop.xlane.xlu0 %415
    %417 = vadd.xlane.f32.xlu0 %v386
    %v418 = vpop.xlane.xlu0 %417
    %419 = vadd.xlane.f32.xlu0 %v388
    %v420 = vpop.xlane.xlu0 %419
    %421 = vadd.xlane.f32.xlu0 %v390
    %v422 = vpop.xlane.xlu0 %421
    %423 = vadd.xlane.f32.xlu0 %v392
    %v424 = vpop.xlane.xlu0 %423
    %425 = vadd.xlane.f32.xlu0 %v394
    %v426 = vpop.xlane.xlu0 %425
    %427 = vadd.xlane.f32.xlu0 %v396
    %v428 = vpop.xlane.xlu0 %427
    %v429 = vlog2.pop %v398
    %v430 = vmul.f32 %v429, 0.6931472
    %v431 = vlog2.pop %v400
    %v432 = vmul.f32 %v431, 0.6931472
    %v433 = vlog2.pop %v402
    %v434 = vmul.f32 %v433, 0.6931472
    %v435 = vlog2.pop %v404
    %v436 = vmul.f32 %v435, 0.6931472
    %v437 = vlog2.pop %v406
    %v438 = vmul.f32 %v437, 0.6931472
    %v439 = vlog2.pop %v408
    %v440 = vmul.f32 %v439, 0.6931472
    %v441 = vlog2.pop %v410
    %v442 = vmul.f32 %v441, 0.6931472
    %v443 = vlog2.pop %v412
    %v444 = vmul.f32 %v443, 0.6931472
    %v445 = vlog2.pop %v414
    %v446 = vmul.f32 %v445, 0.6931472
    %v447 = vlog2.pop %v416
    %v448 = vmul.f32 %v447, 0.6931472
    %v449 = vlog2.pop %v418
    %v450 = vmul.f32 %v449, 0.6931472
    %v451 = vlog2.pop %v420
    %v452 = vmul.f32 %v451, 0.6931472
    %v453 = vlog2.pop %v422
    %v454 = vmul.f32 %v453, 0.6931472
    %v455 = vlog2.pop %v424
    %v456 = vmul.f32 %v455, 0.6931472
    %v457 = vlog2.pop %v426
    %v458 = vmul.f32 %v457, 0.6931472
    %v459 = vlog2.pop %v428
    %v460 = vmul.f32 %v459, 0.6931472
    %v461 = vsub.f32 %v282, %v318
    %v462 = vsub.f32 %v283, %v320
    %v463 = vsub.f32 %v284, %v322
    %v464 = vsub.f32 %v285, %v324
    %v465 = vsub.f32 %v286, %v326
    %v466 = vsub.f32 %v287, %v328
    %v467 = vsub.f32 %v288, %v330
    %v468 = vsub.f32 %v289, %v332
    %v469 = vsub.f32 %v290, %v334
    %v470 = vsub.f32 %v291, %v336
    %v471 = vsub.f32 %v292, %v338
    %v472 = vsub.f32 %v293, %v340
    %v473 = vsub.f32 %v294, %v342
    %v474 = vsub.f32 %v295, %v344
    %v475 = vsub.f32 %v296, %v346
    %v476 = vsub.f32 %v297, %v348
    %v477 = vsub.f32 %v461, %v430
    %v478 = vsub.f32 %v462, %v432
    %v479 = vsub.f32 %v463, %v434
    %v480 = vsub.f32 %v464, %v436
    %v481 = vsub.f32 %v465, %v438
    %v482 = vsub.f32 %v466, %v440
    %v483 = vsub.f32 %v467, %v442
    %v484 = vsub.f32 %v468, %v444
    %v485 = vsub.f32 %v469, %v446
    %v486 = vsub.f32 %v470, %v448
    %v487 = vsub.f32 %v471, %v450
    %v488 = vsub.f32 %v472, %v452
    %v489 = vsub.f32 %v473, %v454
    %v490 = vsub.f32 %v474, %v456
    %v491 = vsub.f32 %v475, %v458
    %v492 = vsub.f32 %v476, %v460
    %493 = vst [vmem:[%s3] sm:$0xff] %v477
    %494 = vst [vmem:[%s3 + $0x8] sm:$0xff] %v478
    %495 = vst [vmem:[%s3 + $0x10] sm:$0xff] %v479
    %496 = vst [vmem:[%s3 + $0x18] sm:$0xff] %v480
    %497 = vst [vmem:[%s3 + $0x20] sm:$0xff] %v481
    %498 = vst [vmem:[%s3 + $0x28] sm:$0xff] %v482
    %499 = vst [vmem:[%s3 + $0x30] sm:$0xff] %v483
    %500 = vst [vmem:[%s3 + $0x38] sm:$0xff] %v484
    %501 = vst [vmem:[%s3 + $0x40] sm:$0xff] %v485
    %502 = vst [vmem:[%s3 + $0x48] sm:$0xff] %v486
    %503 = vst [vmem:[%s3 + $0x50] sm:$0xff] %v487
    %504 = vst [vmem:[%s3 + $0x58] sm:$0xff] %v488
    %505 = vst [vmem:[%s3 + $0x60] sm:$0xff] %v489
    %506 = vst [vmem:[%s3 + $0x68] sm:$0xff] %v490
    %507 = vst [vmem:[%s3 + $0x70] sm:$0xff] %v491
    %508 = vst [vmem:[%s3 + $0x78] sm:$0xff] %v492
  $region21: #{gcn_forward.3} parent=0 // pred_fallthru
    _
  // Predicated region
  $region22: #{gcn_forward.3} parent=0 // pred_check
    _
  $region23: #{gcn_forward.3} parent=0 // pred_check_branch
    %510 = sbr.rel (0) target = $region25
  $region24: #{gcn_forward.3} parent=0 // pred_region
    _
  $region25: #{gcn_forward.3} parent=0 // pred_fallthru
    _
  // Predicated region
  $region26: #{gcn_forward.3} parent=0 // pred_check
    _
  $region27: #{gcn_forward.3} parent=0 // pred_check_branch
    %512 = sbr.rel (0) target = $region29
  $region28: #{gcn_forward.3} parent=0 // pred_region
    _
  $region29: #{gcn_forward.3} parent=0 // pred_fallthru
    _

// kernel: gcn_forward.2
$region0: #{gcn_forward.2}
  #allocation0 [shape = 'u32[]', space=smem, size = 0x4, offset = 0x4, fixed_abs, tag = 'smem constant byte address 0x4 - core index']
  #allocation1 [shape = 'u32[72,128]{1,0:T(1,128)}', space=vmem, size = 0x9000, scoped, tag = 'internal scratch']
  #allocation2 [shape = 'f32[128,128]{1,0:T(8,128)}', space=vmem, size = 0x10000, scoped, tag = 'scratch operand']
  %s0 = inlined_call_operand.vmem [shape: bf16[128,128], index: 0, kind: input, shape index: {}]
  %s1 = inlined_call_operand.vmem [shape: bf16[128,128], index: 1, kind: input, shape index: {}]
  %s2 = inlined_call_operand.vmem [shape: bf16[128,128], index: 2, kind: input, shape index: {}]
  %s3 = inlined_call_operand.vmem [shape: f32[1,128], index: 3, kind: input, shape index: {}]
  %s4 = inlined_call_operand.vmem [shape: bf16[128,128], index: 4, kind: input, shape index: {}]
  %s5 = inlined_call_operand.vmem [shape: bf16[128,128], index: 5, kind: output, shape index: {}]
  %s6 = sld [smem:[#allocation0]]
  $region38: #{gcn_forward.2} parent=0
    _
  %s8 = ssub.s32 1, %s6
  %s9 = scalar_select 0, %s8, %s6
  // Predicated region
  $region2: #{gcn_forward.2} parent=0 // pred_check
    _
  $region3: #{gcn_forward.2} parent=0 // pred_check_branch
    %11 = sbr.rel (0) target = $region5
  $region4: #{gcn_forward.2} parent=0 // pred_region
    _
  $region5: #{gcn_forward.2} parent=0 // pred_fallthru
    _
  // Predicated region
  $region6: #{gcn_forward.2} parent=0 // pred_check
    _
  $region7: #{gcn_forward.2} parent=0 // pred_check_branch
    %13 = sbr.rel (0) target = $region9
  $region8: #{gcn_forward.2} parent=0 // pred_region
    _
  $region9: #{gcn_forward.2} parent=0 // pred_fallthru
    _
  // Predicated region
  $region10: #{gcn_forward.2} parent=0 // pred_check
    _
  $region11: #{gcn_forward.2} parent=0 // pred_check_branch
    %15 = sbr.rel (0) target = $region13
  $region12: #{gcn_forward.2} parent=0 // pred_region
    _
  $region13: #{gcn_forward.2} parent=0 // pred_fallthru
    _
  // Predicated region
  $region14: #{gcn_forward.2} parent=0 // pred_check
    _
  $region15: #{gcn_forward.2} parent=0 // pred_check_branch
    %17 = sbr.rel (0) target = $region17
  $region16: #{gcn_forward.2} parent=0 // pred_region
    _
  $region17: #{gcn_forward.2} parent=0 // pred_fallthru
    _
  // Predicated region
  $region18: #{gcn_forward.2} parent=0 // pred_check
    _
  $region19: #{gcn_forward.2} parent=0 // pred_check_branch
    %19 = sbr.rel (0) target = $region21
  $region20: #{gcn_forward.2} parent=0 // pred_region
    _
  $region21: #{gcn_forward.2} parent=0 // pred_fallthru
    _
  %p20 = scmp.eq.s32.totalorder 0, 0
  // Predicated region
  $region22: #{gcn_forward.2} parent=0 // pred_check
    %p21 = pneg %p20
  $region23: #{gcn_forward.2} parent=0 // pred_check_branch
    %23 = sbr.rel (%p21) target = $region25
  $region24: #{gcn_forward.2} parent=0 // pred_region
    %24 = vst [vmem:[#allocation2] sm:$0xff] 0.0
    %25 = vst [vmem:[#allocation2 + $0x8] sm:$0xff] 0.0
    %26 = vst [vmem:[#allocation2 + $0x10] sm:$0xff] 0.0
    %27 = vst [vmem:[#allocation2 + $0x18] sm:$0xff] 0.0
    %28 = vst [vmem:[#allocation2 + $0x20] sm:$0xff] 0.0
    %29 = vst [vmem:[#allocation2 + $0x28] sm:$0xff] 0.0
    %30 = vst [vmem:[#allocation2 + $0x30] sm:$0xff] 0.0
    %31 = vst [vmem:[#allocation2 + $0x38] sm:$0xff] 0.0
    %32 = vst [vmem:[#allocation2 + $0x40] sm:$0xff] 0.0
    %33 = vst [vmem:[#allocation2 + $0x48] sm:$0xff] 0.0
    %34 = vst [vmem:[#allocation2 + $0x50] sm:$0xff] 0.0
    %35 = vst [vmem:[#allocation2 + $0x58] sm:$0xff] 0.0
    %36 = vst [vmem:[#allocation2 + $0x60] sm:$0xff] 0.0
    %37 = vst [vmem:[#allocation2 + $0x68] sm:$0xff] 0.0
    %38 = vst [vmem:[#allocation2 + $0x70] sm:$0xff] 0.0
    %39 = vst [vmem:[#allocation2 + $0x78] sm:$0xff] 0.0
  $region25: #{gcn_forward.2} parent=0 // pred_fallthru
    _
  %v40 = vld [vmem:[%s0] sm:$0xf]
  %v41 = vld [vmem:[%s0 + $0x4] sm:$0xf]
  %v42 = vld [vmem:[%s0 + $0x8] sm:$0xf]
  %v43 = vld [vmem:[%s0 + $0xc] sm:$0xf]
  %v44 = vld [vmem:[%s0 + $0x10] sm:$0xf]
  %v45 = vld [vmem:[%s0 + $0x14] sm:$0xf]
  %v46 = vld [vmem:[%s0 + $0x18] sm:$0xf]
  %v47 = vld [vmem:[%s0 + $0x1c] sm:$0xf]
  %v48 = vld [vmem:[%s0 + $0x20] sm:$0xf]
  %v49 = vld [vmem:[%s0 + $0x24] sm:$0xf]
  %v50 = vld [vmem:[%s0 + $0x28] sm:$0xf]
  %v51 = vld [vmem:[%s0 + $0x2c] sm:$0xf]
  %v52 = vld [vmem:[%s0 + $0x30] sm:$0xf]
  %v53 = vld [vmem:[%s0 + $0x34] sm:$0xf]
  %v54 = vld [vmem:[%s0 + $0x38] sm:$0xf]
  %v55 = vld [vmem:[%s0 + $0x3c] sm:$0xf]
  %v56 = vld [vmem:[%s1] sm:$0xf]
  %v57 = vld [vmem:[%s1 + $0x4] sm:$0xf]
  %v58 = vld [vmem:[%s1 + $0x8] sm:$0xf]
  %v59 = vld [vmem:[%s1 + $0xc] sm:$0xf]
  %v60 = vld [vmem:[%s1 + $0x10] sm:$0xf]
  %v61 = vld [vmem:[%s1 + $0x14] sm:$0xf]
  %v62 = vld [vmem:[%s1 + $0x18] sm:$0xf]
  %v63 = vld [vmem:[%s1 + $0x1c] sm:$0xf]
  %v64 = vld [vmem:[%s1 + $0x20] sm:$0xf]
  %v65 = vld [vmem:[%s1 + $0x24] sm:$0xf]
  %v66 = vld [vmem:[%s1 + $0x28] sm:$0xf]
  %v67 = vld [vmem:[%s1 + $0x2c] sm:$0xf]
  %v68 = vld [vmem:[%s1 + $0x30] sm:$0xf]
  %v69 = vld [vmem:[%s1 + $0x34] sm:$0xf]
  %v70 = vld [vmem:[%s1 + $0x38] sm:$0xf]
  %v71 = vld [vmem:[%s1 + $0x3c] sm:$0xf]
  %v88 = vunpack.c.l.b16 %v40
  %v89 = vunpack.c.l.b16 %v41
  %v90 = vunpack.c.l.b16 %v42
  %v91 = vunpack.c.l.b16 %v43
  %v92 = vunpack.c.l.b16 %v44
  %v93 = vunpack.c.l.b16 %v45
  %v94 = vunpack.c.l.b16 %v46
  %v95 = vunpack.c.l.b16 %v47
  %v96 = vunpack.c.l.b16 %v48
  %v97 = vunpack.c.l.b16 %v49
  %v98 = vunpack.c.l.b16 %v50
  %v99 = vunpack.c.l.b16 %v51
  %v100 = vunpack.c.l.b16 %v52
  %v101 = vunpack.c.l.b16 %v53
  %v102 = vunpack.c.l.b16 %v54
  %v103 = vunpack.c.l.b16 %v55
  %v104 = vpack.c.b16 %v89, %v88
  %v105 = vpack.c.b16 %v91, %v90
  %v106 = vpack.c.b16 %v93, %v92
  %v107 = vpack.c.b16 %v95, %v94
  %v108 = vpack.c.b16 %v97, %v96
  %v109 = vpack.c.b16 %v99, %v98
  %v110 = vpack.c.b16 %v101, %v100
  %v111 = vpack.c.b16 %v103, %v102
  %v136 = vunpack.c.l.b16 %v56
  %v137 = vunpack.c.l.b16 %v57
  %v138 = vunpack.c.l.b16 %v58
  %v139 = vunpack.c.l.b16 %v59
  %v140 = vunpack.c.l.b16 %v60
  %v141 = vunpack.c.l.b16 %v61
  %v142 = vunpack.c.l.b16 %v62
  %v143 = vunpack.c.l.b16 %v63
  %v144 = vunpack.c.l.b16 %v64
  %v145 = vunpack.c.l.b16 %v65
  %v146 = vunpack.c.l.b16 %v66
  %v147 = vunpack.c.l.b16 %v67
  %v148 = vunpack.c.l.b16 %v68
  %v149 = vunpack.c.l.b16 %v69
  %v150 = vunpack.c.l.b16 %v70
  %v151 = vunpack.c.l.b16 %v71
  %v152 = vpack.c.b16 %v137, %v136
  %v153 = vpack.c.b16 %v139, %v138
  %v154 = vpack.c.b16 %v141, %v140
  %v155 = vpack.c.b16 %v143, %v142
  %v156 = vpack.c.b16 %v145, %v144
  %v157 = vpack.c.b16 %v147, %v146
  %v158 = vpack.c.b16 %v149, %v148
  %v159 = vpack.c.b16 %v151, %v150
  %168 = vmatpush.bf16.msra.mxu0 %v159
  %169 = vmatpush.bf16.msra.mxu0 %v158
  %170 = vmatpush.bf16.msra.mxu0 %v157
  %171 = vmatpush.bf16.msra.mxu0 %v156
  %172 = vmatpush.bf16.msra.mxu0 %v155
  %173 = vmatpush.bf16.msra.mxu0 %v154
  %174 = vmatpush.bf16.msra.mxu0 %v153
  %175 = vmatpush.bf16.msra.mxu0 %v152
  %176 = vmatmul.bf16.gmra.mxu0 %v104
  %v177 = vpop.f32.mrf.mxu0
  %v178 = vadd.f32 0.0, %v177
  %v179 = vpop.f32.mrf.mxu0
  %v180 = vadd.f32 0.0, %v179
  %181 = vmatmul.bf16.gmra.mxu0 %v105
  %v182 = vpop.f32.mrf.mxu0
  %v183 = vadd.f32 0.0, %v182
  %v184 = vpop.f32.mrf.mxu0
  %v185 = vadd.f32 0.0, %v184
  %186 = vmatmul.bf16.gmra.mxu0 %v106
  %v187 = vpop.f32.mrf.mxu0
  %v188 = vadd.f32 0.0, %v187
  %v189 = vpop.f32.mrf.mxu0
  %v190 = vadd.f32 0.0, %v189
  %191 = vmatmul.bf16.gmra.mxu0 %v107
  %v192 = vpop.f32.mrf.mxu0
  %v193 = vadd.f32 0.0, %v192
  %v194 = vpop.f32.mrf.mxu0
  %v195 = vadd.f32 0.0, %v194
  %196 = vmatmul.bf16.gmra.mxu0 %v108
  %v197 = vpop.f32.mrf.mxu0
  %v198 = vadd.f32 0.0, %v197
  %v199 = vpop.f32.mrf.mxu0
  %v200 = vadd.f32 0.0, %v199
  %201 = vmatmul.bf16.gmra.mxu0 %v109
  %v202 = vpop.f32.mrf.mxu0
  %v203 = vadd.f32 0.0, %v202
  %v204 = vpop.f32.mrf.mxu0
  %v205 = vadd.f32 0.0, %v204
  %206 = vmatmul.bf16.gmra.mxu0 %v110
  %v207 = vpop.f32.mrf.mxu0
  %v208 = vadd.f32 0.0, %v207
  %v209 = vpop.f32.mrf.mxu0
  %v210 = vadd.f32 0.0, %v209
  %211 = vmatmul.bf16.gmra.mxu0 %v111
  %v212 = vpop.f32.mrf.mxu0
  %v213 = vadd.f32 0.0, %v212
  %v214 = vpop.f32.mrf.mxu0
  %v215 = vadd.f32 0.0, %v214
  %216 = vdwg.mxu0
  %v217 = vld [vmem:[#allocation2] sm:$0xff]
  %v218 = vld [vmem:[#allocation2 + $0x8] sm:$0xff]
  %v219 = vld [vmem:[#allocation2 + $0x10] sm:$0xff]
  %v220 = vld [vmem:[#allocation2 + $0x18] sm:$0xff]
  %v221 = vld [vmem:[#allocation2 + $0x20] sm:$0xff]
  %v222 = vld [vmem:[#allocation2 + $0x28] sm:$0xff]
  %v223 = vld [vmem:[#allocation2 + $0x30] sm:$0xff]
  %v224 = vld [vmem:[#allocation2 + $0x38] sm:$0xff]
  %v225 = vld [vmem:[#allocation2 + $0x40] sm:$0xff]
  %v226 = vld [vmem:[#allocation2 + $0x48] sm:$0xff]
  %v227 = vld [vmem:[#allocation2 + $0x50] sm:$0xff]
  %v228 = vld [vmem:[#allocation2 + $0x58] sm:$0xff]
  %v229 = vld [vmem:[#allocation2 + $0x60] sm:$0xff]
  %v230 = vld [vmem:[#allocation2 + $0x68] sm:$0xff]
  %v231 = vld [vmem:[#allocation2 + $0x70] sm:$0xff]
  %v232 = vld [vmem:[#allocation2 + $0x78] sm:$0xff]
  %v233 = vld [vmem:[%s2] sm:$0xf]
  %v234 = vld [vmem:[%s2 + $0x4] sm:$0xf]
  %v235 = vld [vmem:[%s2 + $0x8] sm:$0xf]
  %v236 = vld [vmem:[%s2 + $0xc] sm:$0xf]
  %v237 = vld [vmem:[%s2 + $0x10] sm:$0xf]
  %v238 = vld [vmem:[%s2 + $0x14] sm:$0xf]
  %v239 = vld [vmem:[%s2 + $0x18] sm:$0xf]
  %v240 = vld [vmem:[%s2 + $0x1c] sm:$0xf]
  %v241 = vld [vmem:[%s2 + $0x20] sm:$0xf]
  %v242 = vld [vmem:[%s2 + $0x24] sm:$0xf]
  %v243 = vld [vmem:[%s2 + $0x28] sm:$0xf]
  %v244 = vld [vmem:[%s2 + $0x2c] sm:$0xf]
  %v245 = vld [vmem:[%s2 + $0x30] sm:$0xf]
  %v246 = vld [vmem:[%s2 + $0x34] sm:$0xf]
  %v247 = vld [vmem:[%s2 + $0x38] sm:$0xf]
  %v248 = vld [vmem:[%s2 + $0x3c] sm:$0xf]
  %v249 = vpack.c.bf16 %v180, %v178
  %v250 = vpack.c.bf16 %v185, %v183
  %v251 = vpack.c.bf16 %v190, %v188
  %v252 = vpack.c.bf16 %v195, %v193
  %v253 = vpack.c.bf16 %v200, %v198
  %v254 = vpack.c.bf16 %v205, %v203
  %v255 = vpack.c.bf16 %v210, %v208
  %v256 = vpack.c.bf16 %v215, %v213
  %v273 = vunpack.c.l.b16 %v233
  %v274 = vunpack.c.l.b16 %v234
  %v275 = vunpack.c.l.b16 %v235
  %v276 = vunpack.c.l.b16 %v236
  %v277 = vunpack.c.l.b16 %v237
  %v278 = vunpack.c.l.b16 %v238
  %v279 = vunpack.c.l.b16 %v239
  %v280 = vunpack.c.l.b16 %v240
  %v281 = vunpack.c.l.b16 %v241
  %v282 = vunpack.c.l.b16 %v242
  %v283 = vunpack.c.l.b16 %v243
  %v284 = vunpack.c.l.b16 %v244
  %v285 = vunpack.c.l.b16 %v245
  %v286 = vunpack.c.l.b16 %v246
  %v287 = vunpack.c.l.b16 %v247
  %v288 = vunpack.c.l.b16 %v248
  %v289 = vpack.c.b16 %v274, %v273
  %v290 = vpack.c.b16 %v276, %v275
  %v291 = vpack.c.b16 %v278, %v277
  %v292 = vpack.c.b16 %v280, %v279
  %v293 = vpack.c.b16 %v282, %v281
  %v294 = vpack.c.b16 %v284, %v283
  %v295 = vpack.c.b16 %v286, %v285
  %v296 = vpack.c.b16 %v288, %v287
  %305 = vmatpush.bf16.msra.mxu0 %v256
  %306 = vmatpush.bf16.msra.mxu0 %v255
  %307 = vmatpush.bf16.msra.mxu0 %v254
  %308 = vmatpush.bf16.msra.mxu0 %v253
  %309 = vmatpush.bf16.msra.mxu0 %v252
  %310 = vmatpush.bf16.msra.mxu0 %v251
  %311 = vmatpush.bf16.msra.mxu0 %v250
  %312 = vmatpush.bf16.msra.mxu0 %v249
  %313 = vmatmul.bf16.gmra.mxu0 %v289
  %v314 = vpop.f32.mrf.mxu0
  %v315 = vadd.f32 0.0, %v314
  %v316 = vpop.f32.mrf.mxu0
  %v317 = vadd.f32 0.0, %v316
  %318 = vmatmul.bf16.gmra.mxu0 %v290
  %v319 = vpop.f32.mrf.mxu0
  %v320 = vadd.f32 0.0, %v319
  %v321 = vpop.f32.mrf.mxu0
  %v322 = vadd.f32 0.0, %v321
  %323 = vmatmul.bf16.gmra.mxu0 %v291
  %v324 = vpop.f32.mrf.mxu0
  %v325 = vadd.f32 0.0, %v324
  %v326 = vpop.f32.mrf.mxu0
  %v327 = vadd.f32 0.0, %v326
  %328 = vmatmul.bf16.gmra.mxu0 %v292
  %v329 = vpop.f32.mrf.mxu0
  %v330 = vadd.f32 0.0, %v329
  %v331 = vpop.f32.mrf.mxu0
  %v332 = vadd.f32 0.0, %v331
  %333 = vmatmul.bf16.gmra.mxu0 %v293
  %v334 = vpop.f32.mrf.mxu0
  %v335 = vadd.f32 0.0, %v334
  %v336 = vpop.f32.mrf.mxu0
  %v337 = vadd.f32 0.0, %v336
  %338 = vmatmul.bf16.gmra.mxu0 %v294
  %v339 = vpop.f32.mrf.mxu0
  %v340 = vadd.f32 0.0, %v339
  %v341 = vpop.f32.mrf.mxu0
  %v342 = vadd.f32 0.0, %v341
  %343 = vmatmul.bf16.gmra.mxu0 %v295
  %v344 = vpop.f32.mrf.mxu0
  %v345 = vadd.f32 0.0, %v344
  %v346 = vpop.f32.mrf.mxu0
  %v347 = vadd.f32 0.0, %v346
  %348 = vmatmul.bf16.gmra.mxu0 %v296
  %v349 = vpop.f32.mrf.mxu0
  %v350 = vadd.f32 0.0, %v349
  %v351 = vpop.f32.mrf.mxu0
  %v352 = vadd.f32 0.0, %v351
  %353 = vdwg.mxu0
  %v354 = vadd.f32 %v217, %v315
  %v355 = vadd.f32 %v218, %v317
  %v356 = vadd.f32 %v219, %v320
  %v357 = vadd.f32 %v220, %v322
  %v358 = vadd.f32 %v221, %v325
  %v359 = vadd.f32 %v222, %v327
  %v360 = vadd.f32 %v223, %v330
  %v361 = vadd.f32 %v224, %v332
  %v362 = vadd.f32 %v225, %v335
  %v363 = vadd.f32 %v226, %v337
  %v364 = vadd.f32 %v227, %v340
  %v365 = vadd.f32 %v228, %v342
  %v366 = vadd.f32 %v229, %v345
  %v367 = vadd.f32 %v230, %v347
  %v368 = vadd.f32 %v231, %v350
  %v369 = vadd.f32 %v232, %v352
  %370 = vst [vmem:[#allocation2] sm:$0xff] %v354
  %371 = vst [vmem:[#allocation2 + $0x8] sm:$0xff] %v355
  %372 = vst [vmem:[#allocation2 + $0x10] sm:$0xff] %v356
  %373 = vst [vmem:[#allocation2 + $0x18] sm:$0xff] %v357
  %374 = vst [vmem:[#allocation2 + $0x20] sm:$0xff] %v358
  %375 = vst [vmem:[#allocation2 + $0x28] sm:$0xff] %v359
  %376 = vst [vmem:[#allocation2 + $0x30] sm:$0xff] %v360
  %377 = vst [vmem:[#allocation2 + $0x38] sm:$0xff] %v361
  %378 = vst [vmem:[#allocation2 + $0x40] sm:$0xff] %v362
  %379 = vst [vmem:[#allocation2 + $0x48] sm:$0xff] %v363
  %380 = vst [vmem:[#allocation2 + $0x50] sm:$0xff] %v364
  %381 = vst [vmem:[#allocation2 + $0x58] sm:$0xff] %v365
  %382 = vst [vmem:[#allocation2 + $0x60] sm:$0xff] %v366
  %383 = vst [vmem:[#allocation2 + $0x68] sm:$0xff] %v367
  %384 = vst [vmem:[#allocation2 + $0x70] sm:$0xff] %v368
  %385 = vst [vmem:[#allocation2 + $0x78] sm:$0xff] %v369
  // Predicated region
  $region26: #{gcn_forward.2} parent=0 // pred_check
    %p386 = pneg %p20
  $region27: #{gcn_forward.2} parent=0 // pred_check_branch
    %388 = sbr.rel (%p386) target = $region29
  $region28: #{gcn_forward.2} parent=0 // pred_region
    %v389 = vld [vmem:[#allocation2] sm:$0xff]
    %v390 = vld [vmem:[#allocation2 + $0x8] sm:$0xff]
    %v391 = vld [vmem:[#allocation2 + $0x10] sm:$0xff]
    %v392 = vld [vmem:[#allocation2 + $0x18] sm:$0xff]
    %v393 = vld [vmem:[#allocation2 + $0x20] sm:$0xff]
    %v394 = vld [vmem:[#allocation2 + $0x28] sm:$0xff]
    %v395 = vld [vmem:[#allocation2 + $0x30] sm:$0xff]
    %v396 = vld [vmem:[#allocation2 + $0x38] sm:$0xff]
    %v397 = vld [vmem:[#allocation2 + $0x40] sm:$0xff]
    %v398 = vld [vmem:[#allocation2 + $0x48] sm:$0xff]
    %v399 = vld [vmem:[#allocation2 + $0x50] sm:$0xff]
    %v400 = vld [vmem:[#allocation2 + $0x58] sm:$0xff]
    %v401 = vld [vmem:[#allocation2 + $0x60] sm:$0xff]
    %v402 = vld [vmem:[#allocation2 + $0x68] sm:$0xff]
    %v403 = vld [vmem:[#allocation2 + $0x70] sm:$0xff]
    %v404 = vld [vmem:[#allocation2 + $0x78] sm:$0xff]
    %v405 = vld [vmem:[%s3] sm:$0x1]
    %v407 = vperm.slane %v405, 0
    %v409 = vadd.f32 %v389, %v407
    %v410 = vadd.f32 %v390, %v407
    %v411 = vadd.f32 %v391, %v407
    %v412 = vadd.f32 %v392, %v407
    %v413 = vadd.f32 %v393, %v407
    %v414 = vadd.f32 %v394, %v407
    %v415 = vadd.f32 %v395, %v407
    %v416 = vadd.f32 %v396, %v407
    %v417 = vadd.f32 %v397, %v407
    %v418 = vadd.f32 %v398, %v407
    %v419 = vadd.f32 %v399, %v407
    %v420 = vadd.f32 %v400, %v407
    %v421 = vadd.f32 %v401, %v407
    %v422 = vadd.f32 %v402, %v407
    %v423 = vadd.f32 %v403, %v407
    %v424 = vadd.f32 %v404, %v407
    %v425 = vmax.f32 %v409, 0.0
    %v426 = vmax.f32 %v410, 0.0
    %v427 = vmax.f32 %v411, 0.0
    %v428 = vmax.f32 %v412, 0.0
    %v429 = vmax.f32 %v413, 0.0
    %v430 = vmax.f32 %v414, 0.0
    %v431 = vmax.f32 %v415, 0.0
    %v432 = vmax.f32 %v416, 0.0
    %v433 = vmax.f32 %v417, 0.0
    %v434 = vmax.f32 %v418, 0.0
    %v435 = vmax.f32 %v419, 0.0
    %v436 = vmax.f32 %v420, 0.0
    %v437 = vmax.f32 %v421, 0.0
    %v438 = vmax.f32 %v422, 0.0
    %v439 = vmax.f32 %v423, 0.0
    %v440 = vmax.f32 %v424, 0.0
    %v441 = vpack.c.bf16 %v426, %v425
    %v442 = vpack.c.bf16 %v428, %v427
    %v443 = vpack.c.bf16 %v430, %v429
    %v444 = vpack.c.bf16 %v432, %v431
    %v445 = vpack.c.bf16 %v434, %v433
    %v446 = vpack.c.bf16 %v436, %v435
    %v447 = vpack.c.bf16 %v438, %v437
    %v448 = vpack.c.bf16 %v440, %v439
    %v449 = vld [vmem:[%s4] sm:$0xf]
    %v450 = vld [vmem:[%s4 + $0x4] sm:$0xf]
    %v451 = vld [vmem:[%s4 + $0x8] sm:$0xf]
    %v452 = vld [vmem:[%s4 + $0xc] sm:$0xf]
    %v453 = vld [vmem:[%s4 + $0x10] sm:$0xf]
    %v454 = vld [vmem:[%s4 + $0x14] sm:$0xf]
    %v455 = vld [vmem:[%s4 + $0x18] sm:$0xf]
    %v456 = vld [vmem:[%s4 + $0x1c] sm:$0xf]
    %v457 = vld [vmem:[%s4 + $0x20] sm:$0xf]
    %v458 = vld [vmem:[%s4 + $0x24] sm:$0xf]
    %v459 = vld [vmem:[%s4 + $0x28] sm:$0xf]
    %v460 = vld [vmem:[%s4 + $0x2c] sm:$0xf]
    %v461 = vld [vmem:[%s4 + $0x30] sm:$0xf]
    %v462 = vld [vmem:[%s4 + $0x34] sm:$0xf]
    %v463 = vld [vmem:[%s4 + $0x38] sm:$0xf]
    %v464 = vld [vmem:[%s4 + $0x3c] sm:$0xf]
    %v481 = vunpack.c.l.b16 %v449
    %v482 = vunpack.c.l.b16 %v450
    %v483 = vunpack.c.l.b16 %v451
    %v484 = vunpack.c.l.b16 %v452
    %v485 = vunpack.c.l.b16 %v453
    %v486 = vunpack.c.l.b16 %v454
    %v487 = vunpack.c.l.b16 %v455
    %v488 = vunpack.c.l.b16 %v456
    %v489 = vunpack.c.l.b16 %v457
    %v490 = vunpack.c.l.b16 %v458
    %v491 = vunpack.c.l.b16 %v459
    %v492 = vunpack.c.l.b16 %v460
    %v493 = vunpack.c.l.b16 %v461
    %v494 = vunpack.c.l.b16 %v462
    %v495 = vunpack.c.l.b16 %v463
    %v496 = vunpack.c.l.b16 %v464
    %v497 = vpack.c.b16 %v482, %v481
    %v498 = vpack.c.b16 %v484, %v483
    %v499 = vpack.c.b16 %v486, %v485
    %v500 = vpack.c.b16 %v488, %v487
    %v501 = vpack.c.b16 %v490, %v489
    %v502 = vpack.c.b16 %v492, %v491
    %v503 = vpack.c.b16 %v494, %v493
    %v504 = vpack.c.b16 %v496, %v495
    %513 = vmatpush.bf16.msra.mxu0 %v504
    %514 = vmatpush.bf16.msra.mxu0 %v503
    %515 = vmatpush.bf16.msra.mxu0 %v502
    %516 = vmatpush.bf16.msra.mxu0 %v501
    %517 = vmatpush.bf16.msra.mxu0 %v500
    %518 = vmatpush.bf16.msra.mxu0 %v499
    %519 = vmatpush.bf16.msra.mxu0 %v498
    %520 = vmatpush.bf16.msra.mxu0 %v497
    %521 = vmatmul.bf16.gmra.mxu0 %v441
    %v522 = vpop.f32.mrf.mxu0
    %v523 = vadd.f32 0.0, %v522
    %v524 = vpop.f32.mrf.mxu0
    %v525 = vadd.f32 0.0, %v524
    %526 = vmatmul.bf16.gmra.mxu0 %v442
    %v527 = vpop.f32.mrf.mxu0
    %v528 = vadd.f32 0.0, %v527
    %v529 = vpop.f32.mrf.mxu0
    %v530 = vadd.f32 0.0, %v529
    %531 = vmatmul.bf16.gmra.mxu0 %v443
    %v532 = vpop.f32.mrf.mxu0
    %v533 = vadd.f32 0.0, %v532
    %v534 = vpop.f32.mrf.mxu0
    %v535 = vadd.f32 0.0, %v534
    %536 = vmatmul.bf16.gmra.mxu0 %v444
    %v537 = vpop.f32.mrf.mxu0
    %v538 = vadd.f32 0.0, %v537
    %v539 = vpop.f32.mrf.mxu0
    %v540 = vadd.f32 0.0, %v539
    %541 = vmatmul.bf16.gmra.mxu0 %v445
    %v542 = vpop.f32.mrf.mxu0
    %v543 = vadd.f32 0.0, %v542
    %v544 = vpop.f32.mrf.mxu0
    %v545 = vadd.f32 0.0, %v544
    %546 = vmatmul.bf16.gmra.mxu0 %v446
    %v547 = vpop.f32.mrf.mxu0
    %v548 = vadd.f32 0.0, %v547
    %v549 = vpop.f32.mrf.mxu0
    %v550 = vadd.f32 0.0, %v549
    %551 = vmatmul.bf16.gmra.mxu0 %v447
    %v552 = vpop.f32.mrf.mxu0
    %v553 = vadd.f32 0.0, %v552
    %v554 = vpop.f32.mrf.mxu0
    %v555 = vadd.f32 0.0, %v554
    %556 = vmatmul.bf16.gmra.mxu0 %v448
    %v557 = vpop.f32.mrf.mxu0
    %v558 = vadd.f32 0.0, %v557
    %v559 = vpop.f32.mrf.mxu0
    %v560 = vadd.f32 0.0, %v559
    %561 = vdwg.mxu0
    %v562 = vpack.c.bf16 %v523, %v523
    %v563 = vpack.c.bf16 %v525, %v525
    %v564 = vpack.c.bf16 %v528, %v528
    %v565 = vpack.c.bf16 %v530, %v530
    %v566 = vpack.c.bf16 %v533, %v533
    %v567 = vpack.c.bf16 %v535, %v535
    %v568 = vpack.c.bf16 %v538, %v538
    %v569 = vpack.c.bf16 %v540, %v540
    %v570 = vpack.c.bf16 %v543, %v543
    %v571 = vpack.c.bf16 %v545, %v545
    %v572 = vpack.c.bf16 %v548, %v548
    %v573 = vpack.c.bf16 %v550, %v550
    %v574 = vpack.c.bf16 %v553, %v553
    %v575 = vpack.c.bf16 %v555, %v555
    %v576 = vpack.c.bf16 %v558, %v558
    %v577 = vpack.c.bf16 %v560, %v560
    %578 = vst [vmem:[%s5] sm:$0xf] %v562
    %579 = vst [vmem:[%s5 + $0x4] sm:$0xf] %v563
    %580 = vst [vmem:[%s5 + $0x8] sm:$0xf] %v564
    %581 = vst [vmem:[%s5 + $0xc] sm:$0xf] %v565
    %582 = vst [vmem:[%s5 + $0x10] sm:$0xf] %v566
    %583 = vst [vmem:[%s5 + $0x14] sm:$0xf] %v567
    %584 = vst [vmem:[%s5 + $0x18] sm:$0xf] %v568
    %585 = vst [vmem:[%s5 + $0x1c] sm:$0xf] %v569
    %586 = vst [vmem:[%s5 + $0x20] sm:$0xf] %v570
    %587 = vst [vmem:[%s5 + $0x24] sm:$0xf] %v571
    %588 = vst [vmem:[%s5 + $0x28] sm:$0xf] %v572
    %589 = vst [vmem:[%s5 + $0x2c] sm:$0xf] %v573
    %590 = vst [vmem:[%s5 + $0x30] sm:$0xf] %v574
    %591 = vst [vmem:[%s5 + $0x34] sm:$0xf] %v575
    %592 = vst [vmem:[%s5 + $0x38] sm:$0xf] %v576
    %593 = vst [vmem:[%s5 + $0x3c] sm:$0xf] %v577
  $region29: #{gcn_forward.2} parent=0 // pred_fallthru
    _
  // Predicated region
  $region30: #{gcn_forward.2} parent=0 // pred_check
    _
  $region31: #{gcn_forward.2} parent=0 // pred_check_branch
    %595 = sbr.rel (0) target = $region33
  $region32: #{gcn_forward.2} parent=0 // pred_region
    _
  $region33: #{gcn_forward.2} parent=0 // pred_fallthru
    _
  // Predicated region
  $region34: #{gcn_forward.2} parent=0 // pred_check
    _
  $region35: #{gcn_forward.2} parent=0 // pred_check_branch
    %597 = sbr.rel (0) target = $region37
  $region36: #{gcn_forward.2} parent=0 // pred_region
    _
  $region37: #{gcn_forward.2} parent=0 // pred_fallthru
    _

</llo_original>
